<compile_context>
chip_gen: v5e
topology: v5e:2x2
jax: 0.10.0
libtpu: 0.0.40
codegen_flags: <defaults>
</compile_context>

<pallas_src>
import jax
import jax.numpy as jnp
from jax.experimental import pallas as pl
from jax.experimental.pallas import tpu as pltpu


# ----------------------------- schedule (glue) ------------------------------
def linear_beta_schedule(timesteps, beta_start=1e-4, beta_end=0.02):
    return jnp.linspace(beta_start, beta_end, timesteps, dtype=jnp.float32)


def make_ddpm_buffers(timesteps, beta_start=1e-4, beta_end=0.02):
    betas = linear_beta_schedule(timesteps, beta_start, beta_end)
    alphas = 1.0 - betas
    alphas_cumprod = jnp.cumprod(alphas, axis=0)
    sqrt_alphas_cumprod = jnp.sqrt(alphas_cumprod)
    sqrt_one_minus_alphas_cumprod = jnp.sqrt(1.0 - alphas_cumprod)
    return sqrt_alphas_cumprod, sqrt_one_minus_alphas_cumprod


# ------------------------------ Pallas kernel --------------------------------
def ddpm_loss_kernel(sa_ref, sb_ref, x_ref, n_ref, w_ref, psum_ref):
    # sa_ref, sb_ref: VMEM (R, 1)  per-row schedule scalars (R = TB*C rows)
    # x_ref, n_ref:   VMEM (R, HW) flat lane/sublane-dense tiles of x_start / noise
    # w_ref:          VMEM (R, R)  block-diagonal 1x1-conv ("model") weight (resident)
    # psum_ref:       VMEM (1, R, 128) per-block partial sum of squared error
    x = x_ref[...]                         # (R, HW)
    noise = n_ref[...]                     # (R, HW)

    # q_sample: broadcast (R,1) scale * (R,HW) data — pure VPU
    x_noisy = sa_ref[...] * x + sb_ref[...] * noise

    # synthetic model: 1x1 conv over channels as one block-diagonal MXU matmul
    pred = jnp.dot(w_ref[...], x_noisy, preferred_element_type=jnp.float32)

    diff = noise - pred
    sq = diff * diff                       # (R, HW)

    # Partial reduction along lane groups only: static 128-wide slices pick whole
    # vregs, so this is pure VPU adds (no XLU cross-lane reduce, no scalar dep).
    hw = sq.shape[1]
    acc = sq[:, 0:128]
    for g in range(1, hw // 128):
        acc = acc + sq[:, g * 128:(g + 1) * 128]

    psum_ref[0] = acc                      # lane-dense (R, 128) writeback


# -------------------------------- wrapper ------------------------------------
def _choose_batch_block(B, C, HW, budget_bytes=32 * 1024 * 1024):
    """Pick TB: biggest batch block whose double-buffered f32 inputs fit the budget."""
    per_row = 4 * C * HW * 4              # (x + noise) * 2 pipeline buffers, f32
    tb = max(1, min(B, budget_bytes // per_row))
    tb = min(tb, max(1, 256 // C))        # keep block-diagonal weight <= ~256 rows
    # shrink until it tiles the batch evenly and keeps the sublane dim (TB*C) valid
    while tb > 1 and (B % tb != 0 or (tb * C) % 8 != 0):
        tb -= 1
    if (tb * C) % 8 != 0:
        tb = B                            # single block == full array dims (always legal)
    return tb


def ddpm_trainer_forward(key, x_start, model_weight, sqrt_ac, sqrt_1mac, timesteps,
                         tb=None):
    """Returns scalar MSE loss, matching VanillaDDPMTrainer.forward."""
    B, C, H, W = x_start.shape
    HW = H * W
    assert HW % 128 == 0, "pad spatial dims so H*W is a multiple of 128 (lane-dense)"

    k_t, k_n = jax.random.split(key)
    t = jax.random.randint(k_t, (B,), 0, timesteps)                 # torch.randint
    noise = jax.random.normal(k_n, x_start.shape, jnp.float32)      # torch.randn_like
    # TODO(synk): the real denoising model is external to the module; it is stood in
    # for by a deterministic 1x1-conv channel mixer fused into the kernel below.

    # extract(): gather per-batch schedule scalars, expand to one scalar per row
    sa = sqrt_ac[t].astype(jnp.float32)        # (B,)
    sb = sqrt_1mac[t].astype(jnp.float32)      # (B,)
    sa_rows = jnp.repeat(sa, C).reshape(B * C, 1)
    sb_rows = jnp.repeat(sb, C).reshape(B * C, 1)

    # Lane/sublane-dense flat layout: rows = B*C (sublanes), lanes = H*W (free reshape)
    x_flat = x_start.reshape(B * C, HW).astype(jnp.float32)
    n_flat = noise.reshape(B * C, HW)

    if tb is None:
        tb = _choose_batch_block(B, C, HW)
    assert B % tb == 0, "batch block must tile B evenly (pad batch in caller otherwise)"
    nb = B // tb
    R = tb * C

    # Channel-mix "model" as a block-diagonal weight over the TB batch rows in a tile.
    w_bd = jnp.kron(jnp.eye(tb, dtype=jnp.float32), model_weight.astype(jnp.float32))

    psums = pl.pallas_call(
        ddpm_loss_kernel,
        out_shape=jax.ShapeDtypeStruct((nb, R, 128), jnp.float32),
        grid_spec=pltpu.PrefetchScalarGridSpec(
            num_scalar_prefetch=0,
            grid=(nb,),
            in_specs=[
                pl.BlockSpec((R, 1), lambda i: (i, 0)),     # sa per row
                pl.BlockSpec((R, 1), lambda i: (i, 0)),     # sb per row
                pl.BlockSpec((R, HW), lambda i: (i, 0)),    # x_start tile
                pl.BlockSpec((R, HW), lambda i: (i, 0)),    # noise tile
                pl.BlockSpec((R, R), lambda i: (0, 0)),     # block-diag weight (resident)
            ],
            out_specs=pl.BlockSpec((1, R, 128), lambda i: (i, 0, 0)),
        ),
        compiler_params=pltpu.CompilerParams(
            dimension_semantics=("parallel",),              # per-block partials: no carry
            vmem_limit_bytes=48 * 1024 * 1024,              # fits v7x 64 MiB, ample on v5e/v6e
        ),
    )(sa_rows, sb_rows, x_flat, n_flat, w_bd)

    # Tiny epilogue reduction (nb * R * 128 elements) + mean — done in plain JAX.
    return jnp.sum(psums) / jnp.float32(B * C * HW)


# ----------------------------- reference (JAX) --------------------------------
def ddpm_trainer_forward_ref(key, x_start, model_weight, sqrt_ac, sqrt_1mac, timesteps):
    B, C, H, W = x_start.shape
    k_t, k_n = jax.random.split(key)
    t = jax.random.randint(k_t, (B,), 0, timesteps)
    noise = jax.random.normal(k_n, x_start.shape, jnp.float32)
    sa = sqrt_ac[t].astype(jnp.float32).reshape(B, 1, 1, 1)
    sb = sqrt_1mac[t].astype(jnp.float32).reshape(B, 1, 1, 1)
    x_noisy = sa * x_start + sb * noise
    pred = jnp.einsum("oc,bchw->bohw", model_weight, x_noisy)
    return jnp.mean((noise - pred) ** 2)


# --------------------------------- main ---------------------------------------
if __name__ == "__main__":
    TIMESTEPS = 100
    B, C, H, W = 2, 4, 16, 16

    key = jax.random.PRNGKey(0)
    k_x, k_w, k_fwd = jax.random.split(key, 3)

    x_start = jax.random.normal(k_x, (B, C, H, W), jnp.float32)
    # deterministic synthetic "model": 1x1 conv weight (C_out, C_in)
    model_weight = 0.1 * jax.random.normal(k_w, (C, C), jnp.float32)

    sqrt_ac, sqrt_1mac = make_ddpm_buffers(TIMESTEPS)

    loss = ddpm_trainer_forward(k_fwd, x_start, model_weight, sqrt_ac, sqrt_1mac, TIMESTEPS)
    loss = jax.block_until_ready(loss)

    ref = ddpm_trainer_forward_ref(k_fwd, x_start, model_weight, sqrt_ac, sqrt_1mac, TIMESTEPS)
    assert jnp.allclose(loss, ref, rtol=1e-5, atol=1e-5), (loss, ref)

    print("KERNEL_OK")
</pallas_src>

<mosaic_0001>
module attributes {stable_mosaic.version = 11 : i64} {
  func.func @ddpm_loss_kernel(%arg0: i32, %arg1: memref<8x1xf32, #tpu.memory_space<vmem>>, %arg2: memref<8x1xf32, #tpu.memory_space<vmem>>, %arg3: memref<8x256xf32, #tpu.memory_space<vmem>>, %arg4: memref<8x256xf32, #tpu.memory_space<vmem>>, %arg5: memref<8x8xf32, #tpu.memory_space<vmem>>, %arg6: memref<1x8x128xf32, #tpu.memory_space<vmem>>) attributes {dimension_semantics = [#tpu.dimension_semantics<parallel>], iteration_bounds = array<i64: 1>, scalar_prefetch = 0 : i64, scratch_operands = 0 : i64, tpu.core_type = #tpu.core_type<tc>, window_params = [{transform_indices = @transform_0, window_bounds = array<i64: 8, 1>}, {transform_indices = @transform_1, window_bounds = array<i64: 8, 1>}, {transform_indices = @transform_2, window_bounds = array<i64: 8, 256>}, {transform_indices = @transform_3, window_bounds = array<i64: 8, 256>}, {pipeline_mode = #tpu.pipeline_mode<synchronous>, transform_indices = @transform_4, window_bounds = array<i64: 8, 8>}, {transform_indices = @transform_5, window_bounds = array<i64: 1, 8, 128>}]} {
    %c0 = arith.constant 0 : index
    %c0_0 = arith.constant 0 : index
    %0 = vector.load %arg3[%c0, %c0_0] : memref<8x256xf32, #tpu.memory_space<vmem>>, vector<8x256xf32>
    %c0_1 = arith.constant 0 : index
    %c0_2 = arith.constant 0 : index
    %1 = vector.load %arg4[%c0_1, %c0_2] : memref<8x256xf32, #tpu.memory_space<vmem>>, vector<8x256xf32>
    %c0_3 = arith.constant 0 : index
    %c0_4 = arith.constant 0 : index
    %2 = vector.load %arg1[%c0_3, %c0_4] : memref<8x1xf32, #tpu.memory_space<vmem>>, vector<8x1xf32>
    %3 = vector.broadcast %2 : vector<8x1xf32> to vector<8x256xf32>
    %4 = arith.mulf %3, %0 : vector<8x256xf32>
    %c0_5 = arith.constant 0 : index
    %c0_6 = arith.constant 0 : index
    %5 = vector.load %arg2[%c0_5, %c0_6] : memref<8x1xf32, #tpu.memory_space<vmem>>, vector<8x1xf32>
    %6 = vector.broadcast %5 : vector<8x1xf32> to vector<8x256xf32>
    %7 = arith.mulf %6, %1 : vector<8x256xf32>
    %8 = arith.addf %4, %7 : vector<8x256xf32>
    %c0_7 = arith.constant 0 : index
    %c0_8 = arith.constant 0 : index
    %9 = vector.load %arg5[%c0_7, %c0_8] : memref<8x8xf32, #tpu.memory_space<vmem>>, vector<8x8xf32>
    %cst = arith.constant dense<0.000000e+00> : vector<8x256xf32>
    %10 = tpu.matmul %9, %8, %cst {dimension_numbers = #tpu.dot_dimension_numbers<[1], [0], [0], [1], [0, 0, 1, 1], [], []>} : vector<8x8xf32>, vector<8x256xf32>, vector<8x256xf32> -> vector<8x256xf32>
    %11 = arith.subf %1, %10 : vector<8x256xf32>
    %12 = arith.mulf %11, %11 : vector<8x256xf32>
    %13 = vector.extract_strided_slice %12 {offsets = [0, 0], sizes = [8, 128], strides = [1, 1]} : vector<8x256xf32> to vector<8x128xf32>
    %14 = vector.extract_strided_slice %12 {offsets = [0, 128], sizes = [8, 128], strides = [1, 1]} : vector<8x256xf32> to vector<8x128xf32>
    %15 = arith.addf %13, %14 : vector<8x128xf32>
    %c0_9 = arith.constant 0 : index
    %c0_10 = arith.constant 0 : index
    %c0_11 = arith.constant 0 : index
    %16 = vector.load %arg6[%c0_9, %c0_10, %c0_11] : memref<1x8x128xf32, #tpu.memory_space<vmem>>, vector<1x8x128xf32>
    %17 = vector.shape_cast %16 : vector<1x8x128xf32> to vector<8x128xf32>
    %18 = vector.shape_cast %15 : vector<8x128xf32> to vector<1x8x128xf32>
    tpu.vector_store %arg6[%c0_9, %c0_10, %c0_11], %18 {strides = array<i32>} : memref<1x8x128xf32, #tpu.memory_space<vmem>>, vector<1x8x128xf32>,
    return
  }
  func.func @transform_0(%arg0: i32) -> (i32, i32) {
    %c0_i32 = arith.constant 0 : i32
    %c0_i32_0 = arith.constant 0 : i32
    return %arg0, %c0_i32 : i32, i32
  }
  func.func @transform_1(%arg0: i32) -> (i32, i32) {
    %c0_i32 = arith.constant 0 : i32
    %c0_i32_0 = arith.constant 0 : i32
    return %arg0, %c0_i32 : i32, i32
  }
  func.func @transform_2(%arg0: i32) -> (i32, i32) {
    %c0_i32 = arith.constant 0 : i32
    %c0_i32_0 = arith.constant 0 : i32
    return %arg0, %c0_i32 : i32, i32
  }
  func.func @transform_3(%arg0: i32) -> (i32, i32) {
    %c0_i32 = arith.constant 0 : i32
    %c0_i32_0 = arith.constant 0 : i32
    return %arg0, %c0_i32 : i32, i32
  }
  func.func @transform_4(%arg0: i32) -> (i32, i32) {
    %c0_i32 = arith.constant 0 : i32
    %c0_i32_0 = arith.constant 0 : i32
    %c0_i32_1 = arith.constant 0 : i32
    return %c0_i32, %c0_i32_0 : i32, i32
  }
  func.func @transform_5(%arg0: i32) -> (i32, i32, i32) {
    %c0_i32 = arith.constant 0 : i32
    %c0_i32_0 = arith.constant 0 : i32
    %c0_i32_1 = arith.constant 0 : i32
    return %arg0, %c0_i32, %c0_i32_0 : i32, i32, i32
  }
}

</mosaic_0001>

<llo_original>
// kernel: tpu_custom_call.1
$region0: #{tpu_custom_call.1}
  #allocation0 [shape = 'u32[]', space=smem, size = 0x4, offset = 0x4, fixed_abs, tag = 'smem constant byte address 0x4 - core index']
  #allocation1 [shape = 'u32[72,128]{1,0:T(1,128)}', space=vmem, size = 0x9000, scoped, tag = 'internal scratch']
  %s0 = inlined_call_operand.vmem [shape: f32[8,1], index: 0, kind: input, shape index: {}]
  %s1 = inlined_call_operand.vmem [shape: f32[8,1], index: 1, kind: input, shape index: {}]
  %s2 = inlined_call_operand.vmem [shape: f32[8,256], index: 2, kind: input, shape index: {}]
  %s3 = inlined_call_operand.hbm [shape: f32[8,256], index: 3, kind: input, shape index: {}]
  %s4 = inlined_call_operand.hbm [shape: f32[8,8], index: 4, kind: input, shape index: {}]
  %s5 = inlined_call_operand.hbm [shape: f32[1,8,128], index: 5, kind: output, shape index: {}]
  %s6 = sld [smem:[#allocation0]]
  $region38: #{tpu_custom_call.1} parent=0
    _
  %s8 = ssub.s32 1, %s6
  %s9 = scalar_select 0, %s8, %s6
  $region1: #{tpu_custom_call.1} parent=0
    #allocation2 [shape = 'u8[8192]{0}', space=vmem, size = 0x2000, scoped, tag = 'input window, operand 3, single buffered']
    #allocation3 [shape = 's32[1]{0}', space=sflag, size = 0x4, scoped, tag = 'scoped memory for tpu_custom_call.1']
    #allocation4 [shape = 's32[1]{0}', space=sflag, size = 0x4, scoped, tag = 'scoped memory for tpu_custom_call.1']
    #allocation5 [shape = 'u8[4096]{0}', space=vmem, size = 0x1000, scoped, tag = 'input window, operand 4, single buffered']
    #allocation6 [shape = 's32[1]{0}', space=sflag, size = 0x4, scoped, tag = 'scoped memory for tpu_custom_call.1']
    #allocation7 [shape = 'u8[4096]{0}', space=vmem, size = 0x1000, scoped, tag = 'output window, operand 0, single buffered']
    %10 = vsyncpa [#allocation3], 0
    %11 = vsyncpa [#allocation6], 0
    %12 = vsyncpa [#allocation4], 0
    // Predicated region
    $region2: #{tpu_custom_call.1} parent=1 // pred_check
      _
    $region3: #{tpu_custom_call.1} parent=1 // pred_check_branch
      %14 = sbr.rel (0) target = $region5
    $region4: #{tpu_custom_call.1} parent=1 // pred_region
      _
    $region5: #{tpu_custom_call.1} parent=1 // pred_fallthru
      _
    // Predicated region
    $region6: #{tpu_custom_call.1} parent=1 // pred_check
      _
    $region7: #{tpu_custom_call.1} parent=1 // pred_check_branch
      %16 = sbr.rel (0) target = $region9
    $region8: #{tpu_custom_call.1} parent=1 // pred_region
      _
    $region9: #{tpu_custom_call.1} parent=1 // pred_fallthru
      _
    // Predicated region
    $region10: #{tpu_custom_call.1} parent=1 // pred_check
      _
    $region11: #{tpu_custom_call.1} parent=1 // pred_check_branch
      %18 = sbr.rel (0) target = $region13
    $region12: #{tpu_custom_call.1} parent=1 // pred_region
      _
    $region13: #{tpu_custom_call.1} parent=1 // pred_fallthru
      _
    // Predicated region
    $region14: #{tpu_custom_call.1} parent=1 // pred_check
      _
    $region15: #{tpu_custom_call.1} parent=1 // pred_check_branch
      %20 = sbr.rel (0) target = $region17
    $region16: #{tpu_custom_call.1} parent=1 // pred_region
      %22 = vsyncadd [#allocation3], 0
      %s24 = sshll.u32 %s3, 4
      %s25 = int_to_ptr.hbm [resolvable:$true] %s24
      %s26 = sshll.u32 [#allocation2], 4
      %s27 = int_to_ptr.vmem [resolvable:$true] %s26
      %29 = dma.hbm_to_vmem [thread:$0]  %s25, 256, %s27, [#allocation3]
    $region17: #{tpu_custom_call.1} parent=1 // pred_fallthru
      _
    // Predicated region
    $region18: #{tpu_custom_call.1} parent=1 // pred_check
      _
    $region19: #{tpu_custom_call.1} parent=1 // pred_check_branch
      %31 = sbr.rel (0) target = $region21
    $region20: #{tpu_custom_call.1} parent=1 // pred_region
      %33 = vsyncadd [#allocation6], 0
      %s35 = sshll.u32 %s4, 4
      %s36 = int_to_ptr.hbm [resolvable:$true] %s35
      %s37 = sshll.u32 [#allocation5], 4
      %s38 = int_to_ptr.vmem [resolvable:$true] %s37
      %40 = dma.hbm_to_vmem [thread:$0]  %s36, 128, %s38, [#allocation6]
    $region21: #{tpu_custom_call.1} parent=1 // pred_fallthru
      _
    // Predicated region
    $region22: #{tpu_custom_call.1} parent=1 // pred_check
      _
    $region23: #{tpu_custom_call.1} parent=1 // pred_check_branch
      %42 = sbr.rel (0) target = $region25
    $region24: #{tpu_custom_call.1} parent=1 // pred_region
      %44 = dma.done [#allocation3], 256
    $region25: #{tpu_custom_call.1} parent=1 // pred_fallthru
      _
    // Predicated region
    $region26: #{tpu_custom_call.1} parent=1 // pred_check
      _
    $region27: #{tpu_custom_call.1} parent=1 // pred_check_branch
      %46 = sbr.rel (0) target = $region29
    $region28: #{tpu_custom_call.1} parent=1 // pred_region
      %48 = dma.done [#allocation6], 128
    $region29: #{tpu_custom_call.1} parent=1 // pred_fallthru
      _
    %v49 = vld [vmem:[%s2] sm:$0xff]
    %v50 = vld [vmem:[%s2 + $0x8] sm:$0xff]
    %v51 = vld [vmem:[#allocation2] sm:$0xff]
    %v52 = vld [vmem:[#allocation2 + $0x8] sm:$0xff]
    %v53 = vld [vmem:[%s0] sm:$0xff]
    %55 = vset.pattern.permute.xlu0 0
    %56 = vperm.xlu0 %55, %v53
    %v57 = vpop.permute.xlu0 %56
    %v59 = vmul.f32 %v57, %v49
    %v60 = vmul.f32 %v57, %v50
    %v61 = vld [vmem:[%s1] sm:$0xff]
    %63 = vset.pattern.permute.xlu0 0
    %64 = vperm.xlu0 %63, %v61
    %v65 = vpop.permute.xlu0 %64
    %v67 = vmul.f32 %v65, %v51
    %v68 = vmul.f32 %v65, %v52
    %v69 = vadd.f32 %v59, %v67
    %v70 = vadd.f32 %v60, %v68
    %v71 = vld [vmem:[#allocation5] sm:$0xff]
    %vm72 = vcmask 64512
    %v74 = vsel %vm72, %v71, 0
    %76 = vmatpush.msra.mxu0 0.0
    %77 = vmatpush.msra.mxu0 0.0
    %78 = vmatpush.msra.mxu0 0.0
    %79 = vmatpush.msra.mxu0 0.0
    %80 = vmatpush.msra.mxu0 0.0
    %81 = vmatpush.msra.mxu0 0.0
    %82 = vmatpush.msra.mxu0 0.0
    %83 = vmatpush.msra.mxu0 0.0
    %84 = vmatpush.msra.mxu0 0.0
    %85 = vmatpush.msra.mxu0 0.0
    %86 = vmatpush.msra.mxu0 0.0
    %87 = vmatpush.msra.mxu0 0.0
    %88 = vmatpush.msra.mxu0 0.0
    %89 = vmatpush.msra.mxu0 0.0
    %90 = vmatpush.msra.mxu0 0.0
    %91 = vmatpush.msra.mxu0 %v69
    %92 = vmatmul.f32.gmra.mxu0 %v74
    %v93 = vpop.f32.mrf.mxu0
    %v94 = vadd.f32 0.0, %v93
    %95 = vdwg.mxu0
    %96 = vmatpush.msra.mxu0 0.0
    %97 = vmatpush.msra.mxu0 0.0
    %98 = vmatpush.msra.mxu0 0.0
    %99 = vmatpush.msra.mxu0 0.0
    %100 = vmatpush.msra.mxu0 0.0
    %101 = vmatpush.msra.mxu0 0.0
    %102 = vmatpush.msra.mxu0 0.0
    %103 = vmatpush.msra.mxu0 0.0
    %104 = vmatpush.msra.mxu0 0.0
    %105 = vmatpush.msra.mxu0 0.0
    %106 = vmatpush.msra.mxu0 0.0
    %107 = vmatpush.msra.mxu0 0.0
    %108 = vmatpush.msra.mxu0 0.0
    %109 = vmatpush.msra.mxu0 0.0
    %110 = vmatpush.msra.mxu0 0.0
    %111 = vmatpush.msra.mxu0 %v70
    %112 = vmatmul.f32.gmra.mxu0 %v74
    %v113 = vpop.f32.mrf.mxu0
    %v114 = vadd.f32 0.0, %v113
    %115 = vdwg.mxu0
    %v116 = vsub.f32 %v51, %v94
    %v117 = vsub.f32 %v52, %v114
    %v118 = vmul.f32 %v116, %v116
    %v119 = vmul.f32 %v117, %v117
    %v120 = vadd.f32 %v118, %v119
    %121 = vst [vmem:[#allocation7] sm:$0xff] %v120
    // Predicated region
    $region30: #{tpu_custom_call.1} parent=1 // pred_check
      _
    $region31: #{tpu_custom_call.1} parent=1 // pred_check_branch
      %123 = sbr.rel (0) target = $region33
    $region32: #{tpu_custom_call.1} parent=1 // pred_region
      %125 = vsyncadd [#allocation4], 0
      %s127 = sshll.u32 [#allocation7], 4
      %s128 = int_to_ptr.vmem [resolvable:$true] %s127
      %s129 = sshll.u32 %s5, 4
      %s130 = int_to_ptr.hbm [resolvable:$true] %s129
      %132 = dma.vmem_to_hbm [thread:$0]  %s128, 128, %s130, [#allocation4]
    $region33: #{tpu_custom_call.1} parent=1 // pred_fallthru
      _
    // Predicated region
    $region34: #{tpu_custom_call.1} parent=1 // pred_check
      _
    $region35: #{tpu_custom_call.1} parent=1 // pred_check_branch
      %134 = sbr.rel (0) target = $region37
    $region36: #{tpu_custom_call.1} parent=1 // pred_region
      %136 = dma.done [#allocation4], 128
    $region37: #{tpu_custom_call.1} parent=1 // pred_fallthru
      _
    %137 = vsyncpa [#allocation3], 1
    %138 = vsyncpa [#allocation6], 1
    %139 = vsyncpa [#allocation4], 1

</llo_original>
